<compile_context>
chip_gen: v7x
topology: tpu7x:2x2x1
jax: 0.10.0
libtpu: 0.0.40
codegen_flags: <defaults>
</compile_context>

<pallas_src>
import functools

import jax
import jax.numpy as jnp
from jax.experimental import pallas as pl
from jax.experimental.pallas import tpu as pltpu


# ---------------------------------------------------------------------------
# Fused Pallas kernel: one read of (over, under), four weighted copies out
# ---------------------------------------------------------------------------
def _fused_scale_kernel(over_ref, under_ref, pos_s_ref, neg_s_ref,
                        out_under_ref, out_over_ref):
    ov = over_ref[...]          # (Kt, R, C)
    un = under_ref[...]         # (Kt, R, C)
    ps = pos_s_ref[...]         # (Kt, R, 1) -> lane broadcast over C
    ns = neg_s_ref[...]         # (Kt, R, 1)
    out_under_ref[0] = ov * ns  # over  * neg_weights   (lower-bound path)
    out_under_ref[1] = un * ps  # under * pos_weights
    out_over_ref[0] = ov * ps   # over  * pos_weights   (upper-bound path)
    out_over_ref[1] = un * ns   # under * neg_weights


def _pick_block_k(K, R, C, budget_bytes=4 << 20):
    """Largest divisor of K whose per-step working set stays under `budget_bytes`
    (before double buffering).  Keeps blocks multi-MiB where possible while the
    double-buffered footprint stays well below every generation's scoped VMEM
    default (16 MiB v5e, 32 MiB v6e/v7x)."""
    per_k = (6 * R * C + 2 * R) * 4          # 2 inputs + 4 outputs + 2 scale rows
    cap = max(1, budget_bytes // max(per_k, 1))
    kt = max(d for d in range(1, K + 1) if K % d == 0 and d <= cap)
    # v7x has 2 TensorCores: if everything fits one block but the problem is large
    # enough to matter, split so the "parallel" grid axis has >= 2 steps.
    if kt == K and K % 2 == 0 and per_k * K > (1 << 20):
        kt = K // 2
    return kt


def fused_weight_scale(over, under, pos_w, neg_w, n_vars):
    """over, under: (K, R, C) f32; pos_w, neg_w: (K,) f32.

    Returns (out_under, out_over), each (2, K, R, C):
      out_under[0, k] = mult_with_constant(over[k],  neg_w[k])
      out_under[1, k] = mult_with_constant(under[k], pos_w[k])
      out_over[0, k]  = mult_with_constant(over[k],  pos_w[k])
      out_over[1, k]  = mult_with_constant(under[k], neg_w[k])
    where mult_with_constant scales row 0 of every n_vars-row term block.
    """
    over = over.astype(jnp.float32)
    under = under.astype(jnp.float32)
    K, R, C = over.shape

    # Per-row scale tensors, built once in plain XLA (K*R scalars -> negligible).
    row0 = ((jnp.arange(R, dtype=jnp.int32) % n_vars) == 0)[None, :, None]
    pos_s = jnp.where(row0, pos_w.astype(jnp.float32)[:, None, None], 1.0)
    neg_s = jnp.where(row0, neg_w.astype(jnp.float32)[:, None, None], 1.0)

    kt = _pick_block_k(K, R, C)
    nb = K // kt
    step_bytes = (6 * kt * R * C + 2 * kt * R) * 4
    vmem_limit = int(min(48 << 20, max(16 << 20, 4 * step_bytes)))

    out_sds = jax.ShapeDtypeStruct((2, K, R, C), jnp.float32)
    out_under, out_over = pl.pallas_call(
        _fused_scale_kernel,
        out_shape=(out_sds, out_sds),
        grid=(nb,),
        in_specs=[
            pl.BlockSpec((kt, R, C), lambda i: (i, 0, 0)),
            pl.BlockSpec((kt, R, C), lambda i: (i, 0, 0)),
            pl.BlockSpec((kt, R, 1), lambda i: (i, 0, 0)),
            pl.BlockSpec((kt, R, 1), lambda i: (i, 0, 0)),
        ],
        out_specs=(
            pl.BlockSpec((2, kt, R, C), lambda i: (0, i, 0, 0)),
            pl.BlockSpec((2, kt, R, C), lambda i: (0, i, 0, 0)),
        ),
        compiler_params=pltpu.CompilerParams(
            dimension_semantics=("parallel",),
            vmem_limit_bytes=vmem_limit,
        ),
    )(over, under, pos_s, neg_s)
    return out_under, out_over


# ---------------------------------------------------------------------------
# Forward pass (jit-able, static shapes)
# ---------------------------------------------------------------------------
@functools.partial(jax.jit, static_argnames=("n_vars",))
def _node_forward_linear(under, over, under_deg, over_deg, pos_w, neg_w, bias, n_vars):
    K, R, C = over.shape
    out_under, out_over = fused_weight_scale(over, under, pos_w, neg_w, n_vars)

    # add_with_constant: append one constant term (row0 = bias, remaining rows = 1).
    # NOTE: the per-variable coefficient width C is shared by all inputs, so
    # sum_2_polys reduces to plain term concatenation here.
    # TODO(synk): general Bernstein degree elevation for mismatched coefficient widths.
    bias_term = jnp.concatenate(
        [jnp.full((1, C), bias, jnp.float32),
         jnp.ones((max(n_vars - 1, 0), C), jnp.float32)], axis=0)

    input_under = jnp.concatenate([out_under.reshape(2 * K * R, C), bias_term], axis=0)
    input_over = jnp.concatenate([out_over.reshape(2 * K * R, C), bias_term], axis=0)

    # Degree bookkeeping (matches the torch loop: zero-weight or all-zero inputs do
    # not contribute; degrees are >= 0 so a 0 fill is neutral for the max).
    over_nz = jnp.any(over != 0, axis=(1, 2))
    under_nz = jnp.any(under != 0, axis=(1, 2))
    pos_nz = pos_w != 0
    neg_nz = neg_w != 0
    under_deg = under_deg.astype(jnp.float32)
    over_deg = over_deg.astype(jnp.float32)

    def masked_deg_max(deg, keep):
        return jnp.max(jnp.where(keep[:, None], deg, 0.0), axis=0)

    input_under_degree = jnp.maximum(masked_deg_max(over_deg, neg_nz & over_nz),
                                     masked_deg_max(under_deg, pos_nz & under_nz))
    input_over_degree = jnp.maximum(masked_deg_max(over_deg, pos_nz & over_nz),
                                    masked_deg_max(under_deg, neg_nz & under_nz))
    return input_under, input_over, input_under_degree, input_over_degree


# ---------------------------------------------------------------------------
# NodeModule
# ---------------------------------------------------------------------------
class NodeModule:
    def __init__(self, n_vars, node_pos_weights, node_neg_weights, node_bias,
                 activation):
        self.n_vars = n_vars
        self.node_pos_weights = node_pos_weights
        self.node_neg_weights = node_neg_weights
        self.node_bias = node_bias
        self.activation = activation

    def forward(self, layer_inputs_under, layer_inputs_over,
                layer_inputs_under_degrees, layer_inputs_over_degrees):
        if self.activation != 'linear':
            # TODO(synk): 'relu' branch needs ibf_minmax_cpp / relu_monom_coeffs /
            # quad_of_poly which were not provided; not implemented.
            raise NotImplementedError("only activation='linear' is implemented")
        return _node_forward_linear(
            jnp.asarray(layer_inputs_under, jnp.float32),
            jnp.asarray(layer_inputs_over, jnp.float32),
            jnp.asarray(layer_inputs_under_degrees, jnp.float32),
            jnp.asarray(layer_inputs_over_degrees, jnp.float32),
            jnp.asarray(self.node_pos_weights, jnp.float32),
            jnp.asarray(self.node_neg_weights, jnp.float32),
            jnp.asarray(self.node_bias, jnp.float32),
            n_vars=self.n_vars)


# ---------------------------------------------------------------------------
# Plain-XLA reference of the same (static-shape) semantics, for verification
# ---------------------------------------------------------------------------
def _reference_forward_linear(under, over, pos_w, neg_w, bias, n_vars):
    K, R, C = over.shape
    row0 = ((jnp.arange(R) % n_vars) == 0)[None, :, None]

    def scale(x, w):
        return jnp.where(row0, x * w[:, None, None], x)

    bias_term = jnp.concatenate(
        [jnp.full((1, C), bias, jnp.float32),
         jnp.ones((max(n_vars - 1, 0), C), jnp.float32)], axis=0)
    iu = jnp.concatenate([scale(over, neg_w).reshape(K * R, C),
                          scale(under, pos_w).reshape(K * R, C), bias_term], axis=0)
    io = jnp.concatenate([scale(over, pos_w).reshape(K * R, C),
                          scale(under, neg_w).reshape(K * R, C), bias_term], axis=0)
    return iu, io


# ---------------------------------------------------------------------------
# Demo
# ---------------------------------------------------------------------------
if __name__ == "__main__":
    key = jax.random.PRNGKey(0)
    n_vars = 2          # number of variables
    num_inputs = 8      # fan-in K (incoming polynomials)
    T = 4               # terms per input polynomial
    C = 8               # Bernstein coefficients per variable (degree 7)
    R = T * n_vars

    k_under, k_over = jax.random.split(key)
    layer_inputs_under = jax.random.normal(k_under, (num_inputs, R, C), jnp.float32)
    layer_inputs_over = jax.random.normal(k_over, (num_inputs, R, C), jnp.float32)
    # one identically-zero input polynomial exercises the skip/mask semantics
    layer_inputs_under = layer_inputs_under.at[2].set(0.0)
    layer_inputs_under_degrees = jnp.full((num_inputs, n_vars), float(C - 1), jnp.float32)
    layer_inputs_over_degrees = jnp.full((num_inputs, n_vars), float(C - 1), jnp.float32)

    # deterministic "parameters": one scalar weight per incoming polynomial + bias
    node_pos_weights = jnp.array([0.5, -1.0, 0.0, 2.0, 1.0, -0.5, 0.25, 0.0], jnp.float32)
    node_neg_weights = jnp.array([1.5, 0.25, -0.75, 1.0, 0.0, 2.0, -1.25, 0.5], jnp.float32)
    node_bias = 0.3

    mod = NodeModule(n_vars, node_pos_weights, node_neg_weights, node_bias,
                     activation='linear')
    outs = mod.forward(layer_inputs_under, layer_inputs_over,
                       layer_inputs_under_degrees, layer_inputs_over_degrees)
    outs = [jax.block_until_ready(o) for o in outs]

    ref_u, ref_o = _reference_forward_linear(
        layer_inputs_under, layer_inputs_over,
        node_pos_weights, node_neg_weights, jnp.float32(node_bias), n_vars)
    assert bool(jnp.allclose(outs[0], ref_u, atol=1e-6))
    assert bool(jnp.allclose(outs[1], ref_o, atol=1e-6))

    print("KERNEL_OK")
</pallas_src>

<mosaic_0001>
module attributes {stable_mosaic.version = 11 : i64} {
  func.func @_fused_scale_kernel(%arg0: i32, %arg1: memref<8x8x8xf32, #tpu.memory_space<vmem>>, %arg2: memref<8x8x8xf32, #tpu.memory_space<vmem>>, %arg3: memref<8x8x1xf32, #tpu.memory_space<vmem>>, %arg4: memref<8x8x1xf32, #tpu.memory_space<vmem>>, %arg5: memref<2x8x8x8xf32, #tpu.memory_space<vmem>>, %arg6: memref<2x8x8x8xf32, #tpu.memory_space<vmem>>) attributes {dimension_semantics = [#tpu.dimension_semantics<parallel>], iteration_bounds = array<i64: 1>, scalar_prefetch = 0 : i64, scratch_operands = 0 : i64, tpu.core_type = #tpu.core_type<tc>, window_params = [{transform_indices = @transform_0, window_bounds = array<i64: 8, 8, 8>}, {transform_indices = @transform_1, window_bounds = array<i64: 8, 8, 8>}, {transform_indices = @transform_2, window_bounds = array<i64: 8, 8, 1>}, {transform_indices = @transform_3, window_bounds = array<i64: 8, 8, 1>}, {transform_indices = @transform_4, window_bounds = array<i64: 2, 8, 8, 8>}, {transform_indices = @transform_5, window_bounds = array<i64: 2, 8, 8, 8>}]} {
    %c0 = arith.constant 0 : index
    %c0_0 = arith.constant 0 : index
    %c0_1 = arith.constant 0 : index
    %0 = vector.load %arg1[%c0, %c0_0, %c0_1] : memref<8x8x8xf32, #tpu.memory_space<vmem>>, vector<8x8x8xf32>
    %c0_2 = arith.constant 0 : index
    %c0_3 = arith.constant 0 : index
    %c0_4 = arith.constant 0 : index
    %1 = vector.load %arg2[%c0_2, %c0_3, %c0_4] : memref<8x8x8xf32, #tpu.memory_space<vmem>>, vector<8x8x8xf32>
    %c0_5 = arith.constant 0 : index
    %c0_6 = arith.constant 0 : index
    %c0_7 = arith.constant 0 : index
    %2 = vector.load %arg3[%c0_5, %c0_6, %c0_7] : memref<8x8x1xf32, #tpu.memory_space<vmem>>, vector<8x8x1xf32>
    %c0_8 = arith.constant 0 : index
    %c0_9 = arith.constant 0 : index
    %c0_10 = arith.constant 0 : index
    %3 = vector.load %arg4[%c0_8, %c0_9, %c0_10] : memref<8x8x1xf32, #tpu.memory_space<vmem>>, vector<8x8x1xf32>
    %4 = vector.broadcast %3 : vector<8x8x1xf32> to vector<8x8x8xf32>
    %5 = arith.mulf %0, %4 : vector<8x8x8xf32>
    %c0_11 = arith.constant 0 : index
    %c0_12 = arith.constant 0 : index
    %c0_13 = arith.constant 0 : index
    %c0_14 = arith.constant 0 : index
    %6 = vector.load %arg5[%c0_11, %c0_12, %c0_13, %c0_14] : memref<2x8x8x8xf32, #tpu.memory_space<vmem>>, vector<1x8x8x8xf32>
    %7 = vector.shape_cast %6 : vector<1x8x8x8xf32> to vector<8x8x8xf32>
    %8 = vector.shape_cast %5 : vector<8x8x8xf32> to vector<1x8x8x8xf32>
    tpu.vector_store %arg5[%c0_11, %c0_12, %c0_13, %c0_14], %8 {strides = array<i32>} : memref<2x8x8x8xf32, #tpu.memory_space<vmem>>, vector<1x8x8x8xf32>,
    %9 = vector.broadcast %2 : vector<8x8x1xf32> to vector<8x8x8xf32>
    %10 = arith.mulf %1, %9 : vector<8x8x8xf32>
    %c1 = arith.constant 1 : index
    %c0_15 = arith.constant 0 : index
    %c0_16 = arith.constant 0 : index
    %c0_17 = arith.constant 0 : index
    %11 = vector.load %arg5[%c1, %c0_15, %c0_16, %c0_17] : memref<2x8x8x8xf32, #tpu.memory_space<vmem>>, vector<1x8x8x8xf32>
    %12 = vector.shape_cast %11 : vector<1x8x8x8xf32> to vector<8x8x8xf32>
    %13 = vector.shape_cast %10 : vector<8x8x8xf32> to vector<1x8x8x8xf32>
    tpu.vector_store %arg5[%c1, %c0_15, %c0_16, %c0_17], %13 {strides = array<i32>} : memref<2x8x8x8xf32, #tpu.memory_space<vmem>>, vector<1x8x8x8xf32>,
    %14 = vector.broadcast %2 : vector<8x8x1xf32> to vector<8x8x8xf32>
    %15 = arith.mulf %0, %14 : vector<8x8x8xf32>
    %c0_18 = arith.constant 0 : index
    %c0_19 = arith.constant 0 : index
    %c0_20 = arith.constant 0 : index
    %c0_21 = arith.constant 0 : index
    %16 = vector.load %arg6[%c0_18, %c0_19, %c0_20, %c0_21] : memref<2x8x8x8xf32, #tpu.memory_space<vmem>>, vector<1x8x8x8xf32>
    %17 = vector.shape_cast %16 : vector<1x8x8x8xf32> to vector<8x8x8xf32>
    %18 = vector.shape_cast %15 : vector<8x8x8xf32> to vector<1x8x8x8xf32>
    tpu.vector_store %arg6[%c0_18, %c0_19, %c0_20, %c0_21], %18 {strides = array<i32>} : memref<2x8x8x8xf32, #tpu.memory_space<vmem>>, vector<1x8x8x8xf32>,
    %19 = vector.broadcast %3 : vector<8x8x1xf32> to vector<8x8x8xf32>
    %20 = arith.mulf %1, %19 : vector<8x8x8xf32>
    %c1_22 = arith.constant 1 : index
    %c0_23 = arith.constant 0 : index
    %c0_24 = arith.constant 0 : index
    %c0_25 = arith.constant 0 : index
    %21 = vector.load %arg6[%c1_22, %c0_23, %c0_24, %c0_25] : memref<2x8x8x8xf32, #tpu.memory_space<vmem>>, vector<1x8x8x8xf32>
    %22 = vector.shape_cast %21 : vector<1x8x8x8xf32> to vector<8x8x8xf32>
    %23 = vector.shape_cast %20 : vector<8x8x8xf32> to vector<1x8x8x8xf32>
    tpu.vector_store %arg6[%c1_22, %c0_23, %c0_24, %c0_25], %23 {strides = array<i32>} : memref<2x8x8x8xf32, #tpu.memory_space<vmem>>, vector<1x8x8x8xf32>,
    return
  }
  func.func @transform_0(%arg0: i32) -> (i32, i32, i32) {
    %c0_i32 = arith.constant 0 : i32
    %c0_i32_0 = arith.constant 0 : i32
    %c0_i32_1 = arith.constant 0 : i32
    return %arg0, %c0_i32, %c0_i32_0 : i32, i32, i32
  }
  func.func @transform_1(%arg0: i32) -> (i32, i32, i32) {
    %c0_i32 = arith.constant 0 : i32
    %c0_i32_0 = arith.constant 0 : i32
    %c0_i32_1 = arith.constant 0 : i32
    return %arg0, %c0_i32, %c0_i32_0 : i32, i32, i32
  }
  func.func @transform_2(%arg0: i32) -> (i32, i32, i32) {
    %c0_i32 = arith.constant 0 : i32
    %c0_i32_0 = arith.constant 0 : i32
    %c0_i32_1 = arith.constant 0 : i32
    return %arg0, %c0_i32, %c0_i32_0 : i32, i32, i32
  }
  func.func @transform_3(%arg0: i32) -> (i32, i32, i32) {
    %c0_i32 = arith.constant 0 : i32
    %c0_i32_0 = arith.constant 0 : i32
    %c0_i32_1 = arith.constant 0 : i32
    return %arg0, %c0_i32, %c0_i32_0 : i32, i32, i32
  }
  func.func @transform_4(%arg0: i32) -> (i32, i32, i32, i32) {
    %c0_i32 = arith.constant 0 : i32
    %c0_i32_0 = arith.constant 0 : i32
    %c0_i32_1 = arith.constant 0 : i32
    %c0_i32_2 = arith.constant 0 : i32
    return %c0_i32, %arg0, %c0_i32_0, %c0_i32_1 : i32, i32, i32, i32
  }
  func.func @transform_5(%arg0: i32) -> (i32, i32, i32, i32) {
    %c0_i32 = arith.constant 0 : i32
    %c0_i32_0 = arith.constant 0 : i32
    %c0_i32_1 = arith.constant 0 : i32
    %c0_i32_2 = arith.constant 0 : i32
    return %c0_i32, %arg0, %c0_i32_0, %c0_i32_1 : i32, i32, i32, i32
  }
}

</mosaic_0001>

<llo_original>
// kernel: _node_forward_linear.1
$region0: #{_node_forward_linear.1}
  #allocation0 [shape = 'u32[]', space=smem, size = 0x4, offset = 0x4, fixed_abs, tag = 'smem constant byte address 0x4 - core index']
  #allocation1 [shape = 'u32[144,128]{1,0:T(1,128)}', space=vmem, size = 0x12000, scoped, tag = 'internal scratch']
  %s0 = inlined_call_operand.vmem [shape: f32[8,8,8], index: 0, kind: input, shape index: {}]
  %s1 = inlined_call_operand.vmem [shape: f32[8,8,8], index: 1, kind: input, shape index: {}]
  %s2 = inlined_call_operand.vmem [shape: f32[8,8,1], index: 2, kind: input, shape index: {}]
  %s3 = inlined_call_operand.vmem [shape: f32[8,8,1], index: 3, kind: input, shape index: {}]
  %s4 = inlined_call_operand.vmem [shape: f32[2,8,8,8], index: 4, kind: output, shape index: {0}]
  %s5 = inlined_call_operand.vmem [shape: f32[2,8,8,8], index: 5, kind: output, shape index: {1}]
  %6 = xla_tuple %s4, %s5
  %s7 = sld [smem:[#allocation0]]
  $region34: #{_node_forward_linear.1} parent=0
    _
  %s9 = ssub.s32 1, %s7
  %s10 = scalar_select 0, %s9, %s7
  // Predicated region
  $region2: #{_node_forward_linear.1} parent=0 // pred_check
    _
  $region3: #{_node_forward_linear.1} parent=0 // pred_check_branch
    %12 = sbr.rel (0) target = $region5
  $region4: #{_node_forward_linear.1} parent=0 // pred_region
    _
  $region5: #{_node_forward_linear.1} parent=0 // pred_fallthru
    _
  // Predicated region
  $region6: #{_node_forward_linear.1} parent=0 // pred_check
    _
  $region7: #{_node_forward_linear.1} parent=0 // pred_check_branch
    %14 = sbr.rel (0) target = $region9
  $region8: #{_node_forward_linear.1} parent=0 // pred_region
    _
  $region9: #{_node_forward_linear.1} parent=0 // pred_fallthru
    _
  // Predicated region
  $region10: #{_node_forward_linear.1} parent=0 // pred_check
    _
  $region11: #{_node_forward_linear.1} parent=0 // pred_check_branch
    %16 = sbr.rel (0) target = $region13
  $region12: #{_node_forward_linear.1} parent=0 // pred_region
    _
  $region13: #{_node_forward_linear.1} parent=0 // pred_fallthru
    _
  // Predicated region
  $region14: #{_node_forward_linear.1} parent=0 // pred_check
    _
  $region15: #{_node_forward_linear.1} parent=0 // pred_check_branch
    %18 = sbr.rel (0) target = $region17
  $region16: #{_node_forward_linear.1} parent=0 // pred_region
    _
  $region17: #{_node_forward_linear.1} parent=0 // pred_fallthru
    _
  %v19 = vld [vmem:[%s0] sm:$0xff]
  %v20 = vld [vmem:[%s0 + $0x8] sm:$0xff]
  %v21 = vld [vmem:[%s0 + $0x10] sm:$0xff]
  %v22 = vld [vmem:[%s0 + $0x18] sm:$0xff]
  %v23 = vld [vmem:[%s0 + $0x20] sm:$0xff]
  %v24 = vld [vmem:[%s0 + $0x28] sm:$0xff]
  %v25 = vld [vmem:[%s0 + $0x30] sm:$0xff]
  %v26 = vld [vmem:[%s0 + $0x38] sm:$0xff]
  %v27 = vld [vmem:[%s1] sm:$0xff]
  %v28 = vld [vmem:[%s1 + $0x8] sm:$0xff]
  %v29 = vld [vmem:[%s1 + $0x10] sm:$0xff]
  %v30 = vld [vmem:[%s1 + $0x18] sm:$0xff]
  %v31 = vld [vmem:[%s1 + $0x20] sm:$0xff]
  %v32 = vld [vmem:[%s1 + $0x28] sm:$0xff]
  %v33 = vld [vmem:[%s1 + $0x30] sm:$0xff]
  %v34 = vld [vmem:[%s1 + $0x38] sm:$0xff]
  %v35 = vld [vmem:[%s2] sm:$0xff]
  %v36 = vld [vmem:[%s2 + $0x8] sm:$0xff]
  %v37 = vld [vmem:[%s2 + $0x10] sm:$0xff]
  %v38 = vld [vmem:[%s2 + $0x18] sm:$0xff]
  %v39 = vld [vmem:[%s2 + $0x20] sm:$0xff]
  %v40 = vld [vmem:[%s2 + $0x28] sm:$0xff]
  %v41 = vld [vmem:[%s2 + $0x30] sm:$0xff]
  %v42 = vld [vmem:[%s2 + $0x38] sm:$0xff]
  %v43 = vld [vmem:[%s3] sm:$0xff]
  %v44 = vld [vmem:[%s3 + $0x8] sm:$0xff]
  %v45 = vld [vmem:[%s3 + $0x10] sm:$0xff]
  %v46 = vld [vmem:[%s3 + $0x18] sm:$0xff]
  %v47 = vld [vmem:[%s3 + $0x20] sm:$0xff]
  %v48 = vld [vmem:[%s3 + $0x28] sm:$0xff]
  %v49 = vld [vmem:[%s3 + $0x30] sm:$0xff]
  %v50 = vld [vmem:[%s3 + $0x38] sm:$0xff]
  %52 = vset.pattern.permute.xlu0 0
  %53 = vperm.xlu0 %52, %v43
  %v54 = vpop.permute.xlu0 %53
  %57 = vset.pattern.permute.xlu0 0
  %58 = vperm.xlu0 %57, %v44
  %v59 = vpop.permute.xlu0 %58
  %62 = vset.pattern.permute.xlu0 0
  %63 = vperm.xlu0 %62, %v45
  %v64 = vpop.permute.xlu0 %63
  %67 = vset.pattern.permute.xlu0 0
  %68 = vperm.xlu0 %67, %v46
  %v69 = vpop.permute.xlu0 %68
  %72 = vset.pattern.permute.xlu0 0
  %73 = vperm.xlu0 %72, %v47
  %v74 = vpop.permute.xlu0 %73
  %77 = vset.pattern.permute.xlu0 0
  %78 = vperm.xlu0 %77, %v48
  %v79 = vpop.permute.xlu0 %78
  %82 = vset.pattern.permute.xlu0 0
  %83 = vperm.xlu0 %82, %v49
  %v84 = vpop.permute.xlu0 %83
  %87 = vset.pattern.permute.xlu0 0
  %88 = vperm.xlu0 %87, %v50
  %v89 = vpop.permute.xlu0 %88
  %v91 = vmul.f32 %v19, %v54
  %v92 = vmul.f32 %v20, %v59
  %v93 = vmul.f32 %v21, %v64
  %v94 = vmul.f32 %v22, %v69
  %v95 = vmul.f32 %v23, %v74
  %v96 = vmul.f32 %v24, %v79
  %v97 = vmul.f32 %v25, %v84
  %v98 = vmul.f32 %v26, %v89
  %vm99 = vcmask 64512
  %100 = vst.msk [vmem:[%s4] sm:$0xff] %vm99, %v91
  %101 = vst.msk [vmem:[%s4 + $0x8] sm:$0xff] %vm99, %v92
  %102 = vst.msk [vmem:[%s4 + $0x10] sm:$0xff] %vm99, %v93
  %103 = vst.msk [vmem:[%s4 + $0x18] sm:$0xff] %vm99, %v94
  %104 = vst.msk [vmem:[%s4 + $0x20] sm:$0xff] %vm99, %v95
  %105 = vst.msk [vmem:[%s4 + $0x28] sm:$0xff] %vm99, %v96
  %106 = vst.msk [vmem:[%s4 + $0x30] sm:$0xff] %vm99, %v97
  %107 = vst.msk [vmem:[%s4 + $0x38] sm:$0xff] %vm99, %v98
  %109 = vset.pattern.permute.xlu0 0
  %110 = vperm.xlu0 %109, %v35
  %v111 = vpop.permute.xlu0 %110
  %114 = vset.pattern.permute.xlu0 0
  %115 = vperm.xlu0 %114, %v36
  %v116 = vpop.permute.xlu0 %115
  %119 = vset.pattern.permute.xlu0 0
  %120 = vperm.xlu0 %119, %v37
  %v121 = vpop.permute.xlu0 %120
  %124 = vset.pattern.permute.xlu0 0
  %125 = vperm.xlu0 %124, %v38
  %v126 = vpop.permute.xlu0 %125
  %129 = vset.pattern.permute.xlu0 0
  %130 = vperm.xlu0 %129, %v39
  %v131 = vpop.permute.xlu0 %130
  %134 = vset.pattern.permute.xlu0 0
  %135 = vperm.xlu0 %134, %v40
  %v136 = vpop.permute.xlu0 %135
  %139 = vset.pattern.permute.xlu0 0
  %140 = vperm.xlu0 %139, %v41
  %v141 = vpop.permute.xlu0 %140
  %144 = vset.pattern.permute.xlu0 0
  %145 = vperm.xlu0 %144, %v42
  %v146 = vpop.permute.xlu0 %145
  %v148 = vmul.f32 %v27, %v111
  %v149 = vmul.f32 %v28, %v116
  %v150 = vmul.f32 %v29, %v121
  %v151 = vmul.f32 %v30, %v126
  %v152 = vmul.f32 %v31, %v131
  %v153 = vmul.f32 %v32, %v136
  %v154 = vmul.f32 %v33, %v141
  %v155 = vmul.f32 %v34, %v146
  %s156 = scalar_lea.vmem %s4, 64
  %157 = vst.msk [vmem:[%s156] sm:$0xff] %vm99, %v148
  %158 = vst.msk [vmem:[%s156 + $0x8] sm:$0xff] %vm99, %v149
  %159 = vst.msk [vmem:[%s156 + $0x10] sm:$0xff] %vm99, %v150
  %160 = vst.msk [vmem:[%s156 + $0x18] sm:$0xff] %vm99, %v151
  %161 = vst.msk [vmem:[%s156 + $0x20] sm:$0xff] %vm99, %v152
  %162 = vst.msk [vmem:[%s156 + $0x28] sm:$0xff] %vm99, %v153
  %163 = vst.msk [vmem:[%s156 + $0x30] sm:$0xff] %vm99, %v154
  %164 = vst.msk [vmem:[%s156 + $0x38] sm:$0xff] %vm99, %v155
  %v165 = vmul.f32 %v19, %v111
  %v166 = vmul.f32 %v20, %v116
  %v167 = vmul.f32 %v21, %v121
  %v168 = vmul.f32 %v22, %v126
  %v169 = vmul.f32 %v23, %v131
  %v170 = vmul.f32 %v24, %v136
  %v171 = vmul.f32 %v25, %v141
  %v172 = vmul.f32 %v26, %v146
  %173 = vst.msk [vmem:[%s5] sm:$0xff] %vm99, %v165
  %174 = vst.msk [vmem:[%s5 + $0x8] sm:$0xff] %vm99, %v166
  %175 = vst.msk [vmem:[%s5 + $0x10] sm:$0xff] %vm99, %v167
  %176 = vst.msk [vmem:[%s5 + $0x18] sm:$0xff] %vm99, %v168
  %177 = vst.msk [vmem:[%s5 + $0x20] sm:$0xff] %vm99, %v169
  %178 = vst.msk [vmem:[%s5 + $0x28] sm:$0xff] %vm99, %v170
  %179 = vst.msk [vmem:[%s5 + $0x30] sm:$0xff] %vm99, %v171
  %180 = vst.msk [vmem:[%s5 + $0x38] sm:$0xff] %vm99, %v172
  %v181 = vmul.f32 %v27, %v54
  %v182 = vmul.f32 %v28, %v59
  %v183 = vmul.f32 %v29, %v64
  %v184 = vmul.f32 %v30, %v69
  %v185 = vmul.f32 %v31, %v74
  %v186 = vmul.f32 %v32, %v79
  %v187 = vmul.f32 %v33, %v84
  %v188 = vmul.f32 %v34, %v89
  %s189 = scalar_lea.vmem %s5, 64
  %190 = vst.msk [vmem:[%s189] sm:$0xff] %vm99, %v181
  %191 = vst.msk [vmem:[%s189 + $0x8] sm:$0xff] %vm99, %v182
  %192 = vst.msk [vmem:[%s189 + $0x10] sm:$0xff] %vm99, %v183
  %193 = vst.msk [vmem:[%s189 + $0x18] sm:$0xff] %vm99, %v184
  %194 = vst.msk [vmem:[%s189 + $0x20] sm:$0xff] %vm99, %v185
  %195 = vst.msk [vmem:[%s189 + $0x28] sm:$0xff] %vm99, %v186
  %196 = vst.msk [vmem:[%s189 + $0x30] sm:$0xff] %vm99, %v187
  %197 = vst.msk [vmem:[%s189 + $0x38] sm:$0xff] %vm99, %v188
  // Predicated region
  $region18: #{_node_forward_linear.1} parent=0 // pred_check
    _
  $region19: #{_node_forward_linear.1} parent=0 // pred_check_branch
    %199 = sbr.rel (0) target = $region21
  $region20: #{_node_forward_linear.1} parent=0 // pred_region
    _
  $region21: #{_node_forward_linear.1} parent=0 // pred_fallthru
    _
  // Predicated region
  $region22: #{_node_forward_linear.1} parent=0 // pred_check
    _
  $region23: #{_node_forward_linear.1} parent=0 // pred_check_branch
    %201 = sbr.rel (0) target = $region25
  $region24: #{_node_forward_linear.1} parent=0 // pred_region
    _
  $region25: #{_node_forward_linear.1} parent=0 // pred_fallthru
    _
  // Predicated region
  $region26: #{_node_forward_linear.1} parent=0 // pred_check
    _
  $region27: #{_node_forward_linear.1} parent=0 // pred_check_branch
    %203 = sbr.rel (0) target = $region29
  $region28: #{_node_forward_linear.1} parent=0 // pred_region
    _
  $region29: #{_node_forward_linear.1} parent=0 // pred_fallthru
    _
  // Predicated region
  $region30: #{_node_forward_linear.1} parent=0 // pred_check
    _
  $region31: #{_node_forward_linear.1} parent=0 // pred_check_branch
    %205 = sbr.rel (0) target = $region33
  $region32: #{_node_forward_linear.1} parent=0 // pred_region
    _
  $region33: #{_node_forward_linear.1} parent=0 // pred_fallthru
    _

</llo_original>
